<compile_context>
chip_gen: v7x
topology: tpu7x:2x2x1
jax: 0.10.0
libtpu: 0.0.40
codegen_flags: <defaults>
</compile_context>

<pallas_src>
import functools

import jax
import jax.numpy as jnp
from jax.experimental import pallas as pl
from jax.experimental.pallas import tpu as pltpu

LAYER2_SIZE = [16, 8]

_LANE = 128      # batch padding granularity (lane width)
_CHUNK = 1024    # in-kernel column chunk: keeps activations in vregs


def _round_up(n, m):
    return ((n + m - 1) // m) * m


def mlp_kernel(x_ref, w1_ref, b1_ref, w2_ref, b2_ref, w3_ref, b3_ref, o_ref,
               *, chunk):
    """One batch tile: x_ref (2, tile) -> o_ref (1, tile), batch on lanes.

    The tile is processed in static `chunk`-column slices (static lane offsets,
    multiples of 128) so h1/h2 stay in vregs; all three layers run on the MXU
    with f32 accumulation.
    """
    f32 = jnp.float32
    w1 = w1_ref[...].astype(f32)   # (16, 2)
    b1 = b1_ref[...].astype(f32)   # (16, 1)
    w2 = w2_ref[...].astype(f32)   # (8, 16)
    b2 = b2_ref[...].astype(f32)   # (8, 1)
    w3 = w3_ref[...].astype(f32)   # (8, 8)  -- row 0 real, rows 1..7 zero
    b3 = b3_ref[...].astype(f32)   # (8, 1)

    tile = x_ref.shape[1]
    off = 0
    while off < tile:                         # static Python loop
        width = min(chunk, tile - off)        # always a multiple of 128
        x = x_ref[:, off:off + width].astype(f32)                         # (2, w)
        h1 = jnp.maximum(jnp.dot(w1, x, preferred_element_type=f32) + b1, 0.0)
        h2 = jnp.maximum(jnp.dot(w2, h1, preferred_element_type=f32) + b2, 0.0)
        y = jnp.dot(w3, h2, preferred_element_type=f32) + b3              # (8, w)
        o_ref[:, off:off + width] = y[0:1, :].astype(o_ref.dtype)
        off += width


@functools.partial(jax.jit, static_argnames=("tile_b",))
def boiling_point_nn_t(x_t, params, tile_b=65536):
    """Batch-on-lanes forward: x_t (2, B) -> (1, B).

    Copy-free path: when B is a multiple of 128, no wrapper-side pad/slice is
    materialized at all.
    """
    (w1, b1), (w2, b2), (w3, b3) = params
    in_f, batch = x_t.shape

    # Pad only to a lane multiple (128), never to a whole tile.
    padded = _round_up(batch, _LANE)
    n_steps = pl.cdiv(padded, tile_b)
    if n_steps == 1 and padded >= 2 * _LANE:
        n_steps = 2                  # >=2 grid steps so v7x megacore can split the batch
    tile = _round_up(pl.cdiv(padded, n_steps), _LANE)
    padded = tile * n_steps          # adds at most (n_steps - 1) * 128 extra columns
    chunk = min(_CHUNK, tile)

    xt = x_t if padded == batch else jnp.pad(x_t, ((0, 0), (0, padded - batch)))

    col = lambda b: b.reshape(-1, 1)
    # Pad layer 3 from 1 to 8 output rows so its matmul is MXU-friendly; the
    # kernel stores row 0 only (the extra rows cost nothing on an idle MXU).
    w3p = jnp.pad(w3, ((0, 8 - w3.shape[0]), (0, 0)))
    b3p = jnp.pad(col(b3), ((0, 8 - b3.shape[0]), (0, 0)))

    def resident(a):                 # tiny array, VMEM-resident across all grid steps
        return pl.BlockSpec(a.shape, lambda i: (0, 0))

    itemsize = jnp.dtype(x_t.dtype).itemsize
    cost = pl.CostEstimate(
        flops=2 * padded * (2 * 16 + 16 * 8 + 8 * 8),
        transcendentals=0,
        bytes_accessed=(2 + 1) * padded * itemsize)

    out_t = pl.pallas_call(
        functools.partial(mlp_kernel, chunk=chunk),
        out_shape=jax.ShapeDtypeStruct((1, padded), x_t.dtype),
        grid=(n_steps,),
        in_specs=[
            pl.BlockSpec((in_f, tile), lambda i: (0, i)),     # streaming batch tile
            resident(w1), resident(col(b1)),
            resident(w2), resident(col(b2)),
            resident(w3p), resident(b3p),
        ],
        out_specs=pl.BlockSpec((1, tile), lambda i: (0, i)),  # lane-dense output tile
        compiler_params=pltpu.CompilerParams(
            dimension_semantics=("parallel",)),
        cost_estimate=cost,
    )(xt, w1, col(b1), w2, col(b2), w3p, b3p)

    return out_t if padded == batch else out_t[:, :batch]


@functools.partial(jax.jit, static_argnames=("tile_b",))
def boiling_point_nn(x, params, tile_b=65536):
    """PyTorch-layout forward: x (B, 2) -> (B, 1).

    Only adds the (B,2)<->(2,B) transposes required by the module's layout;
    use boiling_point_nn_t to keep the pipeline batch-on-lanes end to end.
    """
    return boiling_point_nn_t(x.T, params, tile_b=tile_b).T


def init_params(key):
    # PyTorch nn.Linear-style init: U(-1/sqrt(fan_in), 1/sqrt(fan_in)), w = (out, in).
    dims = [(2, LAYER2_SIZE[0]), (LAYER2_SIZE[0], LAYER2_SIZE[1]), (LAYER2_SIZE[1], 1)]
    params = []
    for fan_in, fan_out in dims:
        key, kw, kb = jax.random.split(key, 3)
        bound = 1.0 / (fan_in ** 0.5)
        w = jax.random.uniform(kw, (fan_out, fan_in), jnp.float32, -bound, bound)
        b = jax.random.uniform(kb, (fan_out,), jnp.float32, -bound, bound)
        params.append((w, b))
    return tuple(params)


def reference_forward(x, params):
    """Pure-JAX reference with f32-accurate dots."""
    (w1, b1), (w2, b2), (w3, b3) = params
    hp = jax.lax.Precision.HIGHEST
    h = jnp.maximum(jnp.dot(x, w1.T, precision=hp) + b1, 0.0)
    h = jnp.maximum(jnp.dot(h, w2.T, precision=hp) + b2, 0.0)
    return jnp.dot(h, w3.T, precision=hp) + b3


if __name__ == "__main__":
    key = jax.random.PRNGKey(0)
    kp, kx, kx2 = jax.random.split(key, 3)
    params = init_params(kp)

    # PyTorch-layout path: (B, 2) -> (B, 1).
    batch = 8
    x = jax.random.normal(kx, (batch, 2), jnp.float32)
    out = jax.block_until_ready(boiling_point_nn(x, params))
    ref = reference_forward(x, params)
    assert out.shape == (batch, 1)
    assert jnp.allclose(out, ref, atol=1e-4, rtol=1e-4), (
        f"max abs err = {jnp.max(jnp.abs(out - ref))}")

    # Copy-free batch-on-lanes path (multi-step grid): (2, B) -> (1, B).
    xb = jax.random.normal(kx2, (2, 512), jnp.float32)
    out_t = jax.block_until_ready(boiling_point_nn_t(xb, params))
    ref_t = reference_forward(xb.T, params).T
    assert out_t.shape == (1, 512)
    assert jnp.allclose(out_t, ref_t, atol=1e-4, rtol=1e-4), (
        f"max abs err = {jnp.max(jnp.abs(out_t - ref_t))}")

    print("KERNEL_OK")
</pallas_src>

<mosaic_0001>
module attributes {stable_mosaic.version = 11 : i64} {
  func.func @mlp_kernel(%arg0: i32, %arg1: memref<2x128xf32, #tpu.memory_space<vmem>>, %arg2: memref<16x2xf32, #tpu.memory_space<vmem>>, %arg3: memref<16x1xf32, #tpu.memory_space<vmem>>, %arg4: memref<8x16xf32, #tpu.memory_space<vmem>>, %arg5: memref<8x1xf32, #tpu.memory_space<vmem>>, %arg6: memref<8x8xf32, #tpu.memory_space<vmem>>, %arg7: memref<8x1xf32, #tpu.memory_space<vmem>>, %arg8: memref<1x128xf32, #tpu.memory_space<vmem>>) attributes {dimension_semantics = [#tpu.dimension_semantics<parallel>], iteration_bounds = array<i64: 1>, scalar_prefetch = 0 : i64, scratch_operands = 0 : i64, tpu.core_type = #tpu.core_type<tc>, window_params = [{transform_indices = @transform_0, window_bounds = array<i64: 2, 128>}, {pipeline_mode = #tpu.pipeline_mode<synchronous>, transform_indices = @transform_1, window_bounds = array<i64: 16, 2>}, {pipeline_mode = #tpu.pipeline_mode<synchronous>, transform_indices = @transform_2, window_bounds = array<i64: 16, 1>}, {pipeline_mode = #tpu.pipeline_mode<synchronous>, transform_indices = @transform_3, window_bounds = array<i64: 8, 16>}, {pipeline_mode = #tpu.pipeline_mode<synchronous>, transform_indices = @transform_4, window_bounds = array<i64: 8, 1>}, {pipeline_mode = #tpu.pipeline_mode<synchronous>, transform_indices = @transform_5, window_bounds = array<i64: 8, 8>}, {pipeline_mode = #tpu.pipeline_mode<synchronous>, transform_indices = @transform_6, window_bounds = array<i64: 8, 1>}, {transform_indices = @transform_7, window_bounds = array<i64: 1, 128>}]} {
    %c0 = arith.constant 0 : index
    %c0_0 = arith.constant 0 : index
    %0 = vector.load %arg2[%c0, %c0_0] : memref<16x2xf32, #tpu.memory_space<vmem>>, vector<16x2xf32>
    %c0_1 = arith.constant 0 : index
    %c0_2 = arith.constant 0 : index
    %1 = vector.load %arg3[%c0_1, %c0_2] : memref<16x1xf32, #tpu.memory_space<vmem>>, vector<16x1xf32>
    %c0_3 = arith.constant 0 : index
    %c0_4 = arith.constant 0 : index
    %2 = vector.load %arg4[%c0_3, %c0_4] : memref<8x16xf32, #tpu.memory_space<vmem>>, vector<8x16xf32>
    %c0_5 = arith.constant 0 : index
    %c0_6 = arith.constant 0 : index
    %3 = vector.load %arg5[%c0_5, %c0_6] : memref<8x1xf32, #tpu.memory_space<vmem>>, vector<8x1xf32>
    %c0_7 = arith.constant 0 : index
    %c0_8 = arith.constant 0 : index
    %4 = vector.load %arg6[%c0_7, %c0_8] : memref<8x8xf32, #tpu.memory_space<vmem>>, vector<8x8xf32>
    %c0_9 = arith.constant 0 : index
    %c0_10 = arith.constant 0 : index
    %5 = vector.load %arg7[%c0_9, %c0_10] : memref<8x1xf32, #tpu.memory_space<vmem>>, vector<8x1xf32>
    %c0_11 = arith.constant 0 : index
    %c0_12 = arith.constant 0 : index
    %6 = vector.load %arg1[%c0_11, %c0_12] : memref<2x128xf32, #tpu.memory_space<vmem>>, vector<2x128xf32>
    %cst = arith.constant dense<0.000000e+00> : vector<16x128xf32>
    %7 = tpu.matmul %0, %6, %cst {dimension_numbers = #tpu.dot_dimension_numbers<[1], [0], [0], [1], [0, 0, 1, 1], [], []>} : vector<16x2xf32>, vector<2x128xf32>, vector<16x128xf32> -> vector<16x128xf32>
    %8 = vector.broadcast %1 : vector<16x1xf32> to vector<16x128xf32>
    %9 = arith.addf %7, %8 : vector<16x128xf32>
    %cst_13 = arith.constant 0.000000e+00 : f32
    %10 = vector.broadcast %cst_13 : f32 to vector<16x128xf32>
    %11 = arith.maximumf %9, %10 : vector<16x128xf32>
    %cst_14 = arith.constant dense<0.000000e+00> : vector<8x128xf32>
    %12 = tpu.matmul %2, %11, %cst_14 {dimension_numbers = #tpu.dot_dimension_numbers<[1], [0], [0], [1], [0, 0, 1, 1], [], []>} : vector<8x16xf32>, vector<16x128xf32>, vector<8x128xf32> -> vector<8x128xf32>
    %13 = vector.broadcast %3 : vector<8x1xf32> to vector<8x128xf32>
    %14 = arith.addf %12, %13 : vector<8x128xf32>
    %cst_15 = arith.constant 0.000000e+00 : f32
    %15 = vector.broadcast %cst_15 : f32 to vector<8x128xf32>
    %16 = arith.maximumf %14, %15 : vector<8x128xf32>
    %cst_16 = arith.constant dense<0.000000e+00> : vector<8x128xf32>
    %17 = tpu.matmul %4, %16, %cst_16 {dimension_numbers = #tpu.dot_dimension_numbers<[1], [0], [0], [1], [0, 0, 1, 1], [], []>} : vector<8x8xf32>, vector<8x128xf32>, vector<8x128xf32> -> vector<8x128xf32>
    %18 = vector.broadcast %5 : vector<8x1xf32> to vector<8x128xf32>
    %19 = arith.addf %17, %18 : vector<8x128xf32>
    %20 = vector.extract_strided_slice %19 {offsets = [0, 0], sizes = [1, 128], strides = [1, 1]} : vector<8x128xf32> to vector<1x128xf32>
    %c0_17 = arith.constant 0 : index
    %c0_18 = arith.constant 0 : index
    %21 = vector.load %arg8[%c0_17, %c0_18] : memref<1x128xf32, #tpu.memory_space<vmem>>, vector<1x128xf32>
    tpu.vector_store %arg8[%c0_17, %c0_18], %20 {strides = array<i32>} : memref<1x128xf32, #tpu.memory_space<vmem>>, vector<1x128xf32>,
    return
  }
  func.func @transform_0(%arg0: i32) -> (i32, i32) {
    %c0_i32 = arith.constant 0 : i32
    %c0_i32_0 = arith.constant 0 : i32
    return %c0_i32, %arg0 : i32, i32
  }
  func.func @transform_1(%arg0: i32) -> (i32, i32) {
    %c0_i32 = arith.constant 0 : i32
    %c0_i32_0 = arith.constant 0 : i32
    %c0_i32_1 = arith.constant 0 : i32
    return %c0_i32, %c0_i32_0 : i32, i32
  }
  func.func @transform_2(%arg0: i32) -> (i32, i32) {
    %c0_i32 = arith.constant 0 : i32
    %c0_i32_0 = arith.constant 0 : i32
    %c0_i32_1 = arith.constant 0 : i32
    return %c0_i32, %c0_i32_0 : i32, i32
  }
  func.func @transform_3(%arg0: i32) -> (i32, i32) {
    %c0_i32 = arith.constant 0 : i32
    %c0_i32_0 = arith.constant 0 : i32
    %c0_i32_1 = arith.constant 0 : i32
    return %c0_i32, %c0_i32_0 : i32, i32
  }
  func.func @transform_4(%arg0: i32) -> (i32, i32) {
    %c0_i32 = arith.constant 0 : i32
    %c0_i32_0 = arith.constant 0 : i32
    %c0_i32_1 = arith.constant 0 : i32
    return %c0_i32, %c0_i32_0 : i32, i32
  }
  func.func @transform_5(%arg0: i32) -> (i32, i32) {
    %c0_i32 = arith.constant 0 : i32
    %c0_i32_0 = arith.constant 0 : i32
    %c0_i32_1 = arith.constant 0 : i32
    return %c0_i32, %c0_i32_0 : i32, i32
  }
  func.func @transform_6(%arg0: i32) -> (i32, i32) {
    %c0_i32 = arith.constant 0 : i32
    %c0_i32_0 = arith.constant 0 : i32
    %c0_i32_1 = arith.constant 0 : i32
    return %c0_i32, %c0_i32_0 : i32, i32
  }
  func.func @transform_7(%arg0: i32) -> (i32, i32) {
    %c0_i32 = arith.constant 0 : i32
    %c0_i32_0 = arith.constant 0 : i32
    return %c0_i32, %arg0 : i32, i32
  }
}

</mosaic_0001>

<llo_original>
// kernel: boiling_point_nn_t.1
$region0: #{boiling_point_nn_t.1}
  #allocation0 [shape = 'u32[]', space=smem, size = 0x4, offset = 0x4, fixed_abs, tag = 'smem constant byte address 0x4 - core index']
  #allocation1 [shape = 'u32[144,128]{1,0:T(1,128)}', space=vmem, size = 0x12000, scoped, tag = 'internal scratch']
  %s0 = inlined_call_operand.vmem [shape: f32[2,128], index: 0, kind: input, shape index: {}]
  %s1 = inlined_call_operand.vmem [shape: f32[16,2], index: 1, kind: input, shape index: {}]
  %s2 = inlined_call_operand.vmem [shape: f32[16,1], index: 2, kind: input, shape index: {}]
  %s3 = inlined_call_operand.vmem [shape: f32[8,16], index: 3, kind: input, shape index: {}]
  %s4 = inlined_call_operand.vmem [shape: f32[8,1], index: 4, kind: input, shape index: {}]
  %s5 = inlined_call_operand.vmem [shape: f32[8,8], index: 5, kind: input, shape index: {}]
  %s6 = inlined_call_operand.vmem [shape: f32[8,1], index: 6, kind: input, shape index: {}]
  %s7 = inlined_call_operand.hbm [shape: f32[1,128], index: 7, kind: output, shape index: {}]
  %s8 = sld [smem:[#allocation0]]
  $region38: #{boiling_point_nn_t.1} parent=0
    _
  %s10 = ssub.s32 1, %s8
  %s11 = scalar_select 0, %s10, %s8
  $region1: #{boiling_point_nn_t.1} parent=0
    #allocation2 [shape = 'u8[512]{0}', space=vmem, size = 0x400, scoped, tag = 'output window, operand 0, single buffered']
    #allocation3 [shape = 's32[1]{0}', space=sflag, size = 0x4, scoped, tag = 'scoped memory for boiling_point_nn_t.1']
    %12 = vsyncpa [#allocation3], 0
    // Predicated region
    $region2: #{boiling_point_nn_t.1} parent=1 // pred_check
      _
    $region3: #{boiling_point_nn_t.1} parent=1 // pred_check_branch
      %14 = sbr.rel (0) target = $region5
    $region4: #{boiling_point_nn_t.1} parent=1 // pred_region
      _
    $region5: #{boiling_point_nn_t.1} parent=1 // pred_fallthru
      _
    // Predicated region
    $region6: #{boiling_point_nn_t.1} parent=1 // pred_check
      _
    $region7: #{boiling_point_nn_t.1} parent=1 // pred_check_branch
      %16 = sbr.rel (0) target = $region9
    $region8: #{boiling_point_nn_t.1} parent=1 // pred_region
      _
    $region9: #{boiling_point_nn_t.1} parent=1 // pred_fallthru
      _
    // Predicated region
    $region10: #{boiling_point_nn_t.1} parent=1 // pred_check
      _
    $region11: #{boiling_point_nn_t.1} parent=1 // pred_check_branch
      %18 = sbr.rel (0) target = $region13
    $region12: #{boiling_point_nn_t.1} parent=1 // pred_region
      _
    $region13: #{boiling_point_nn_t.1} parent=1 // pred_fallthru
      _
    // Predicated region
    $region14: #{boiling_point_nn_t.1} parent=1 // pred_check
      _
    $region15: #{boiling_point_nn_t.1} parent=1 // pred_check_branch
      %20 = sbr.rel (0) target = $region17
    $region16: #{boiling_point_nn_t.1} parent=1 // pred_region
      _
    $region17: #{boiling_point_nn_t.1} parent=1 // pred_fallthru
      _
    // Predicated region
    $region18: #{boiling_point_nn_t.1} parent=1 // pred_check
      _
    $region19: #{boiling_point_nn_t.1} parent=1 // pred_check_branch
      %22 = sbr.rel (0) target = $region21
    $region20: #{boiling_point_nn_t.1} parent=1 // pred_region
      _
    $region21: #{boiling_point_nn_t.1} parent=1 // pred_fallthru
      _
    // Predicated region
    $region22: #{boiling_point_nn_t.1} parent=1 // pred_check
      _
    $region23: #{boiling_point_nn_t.1} parent=1 // pred_check_branch
      %24 = sbr.rel (0) target = $region25
    $region24: #{boiling_point_nn_t.1} parent=1 // pred_region
      _
    $region25: #{boiling_point_nn_t.1} parent=1 // pred_fallthru
      _
    // Predicated region
    $region26: #{boiling_point_nn_t.1} parent=1 // pred_check
      _
    $region27: #{boiling_point_nn_t.1} parent=1 // pred_check_branch
      %26 = sbr.rel (0) target = $region29
    $region28: #{boiling_point_nn_t.1} parent=1 // pred_region
      _
    $region29: #{boiling_point_nn_t.1} parent=1 // pred_fallthru
      _
    %v27 = vld [vmem:[%s1] sm:$0xff]
    %v28 = vld [vmem:[%s1 + $0x8] sm:$0xff]
    %v29 = vld [vmem:[%s2] sm:$0xff]
    %v30 = vld [vmem:[%s2 + $0x8] sm:$0xff]
    %v31 = vld [vmem:[%s3] sm:$0xff]
    %v32 = vld [vmem:[%s4] sm:$0xff]
    %v33 = vld [vmem:[%s5] sm:$0xff]
    %v34 = vld [vmem:[%s6] sm:$0xff]
    %v35 = vld [vmem:[%s0] sm:$0x3]
    %37 = vset.pattern.permute.xlu0 0
    %38 = vperm.xlu0 %37, %v29
    %v39 = vpop.permute.xlu0 %38
    %42 = vset.pattern.permute.xlu0 0
    %43 = vperm.xlu0 %42, %v30
    %v44 = vpop.permute.xlu0 %43
    %vm46 = vcmask 15360
    %v48 = vsel %vm46, %v27, 0
    %v51 = vsel %vm46, %v28, 0
    %vm53 = vcmask 1041408
    %v55 = vsel %vm53, %v35, 0
    %57 = vmatprep.subr.mxu0 0.0
    %58 = vmatpush1.msra.mxu0 %v55
    %59 = vmatprep.subr.mxu0 0.0
    %60 = vmatpush1.msra.mxu0 0.0
    %61 = vmatprep.subr.mxu0 0.0
    %62 = vmatpush1.msra.mxu0 0.0
    %63 = vmatprep.subr.mxu0 0.0
    %64 = vmatpush1.msra.mxu0 0.0
    %65 = vmatprep.subr.mxu0 0.0
    %66 = vmatpush1.msra.mxu0 0.0
    %67 = vmatprep.subr.mxu0 0.0
    %68 = vmatpush1.msra.mxu0 0.0
    %69 = vmatprep.subr.mxu0 0.0
    %70 = vmatpush1.msra.mxu0 0.0
    %71 = vmatprep.subr.mxu0 0.0
    %72 = vmatpush1.msra.mxu0 0.0
    %73 = vmatprep.subr.mxu0 0.0
    %74 = vmatpush1.msra.mxu0 0.0
    %75 = vmatprep.subr.mxu0 0.0
    %76 = vmatpush1.msra.mxu0 0.0
    %77 = vmatprep.subr.mxu0 0.0
    %78 = vmatpush1.msra.mxu0 0.0
    %79 = vmatprep.subr.mxu0 0.0
    %80 = vmatpush1.msra.mxu0 0.0
    %81 = vmatprep.subr.mxu0 0.0
    %82 = vmatpush1.msra.mxu0 0.0
    %83 = vmatprep.subr.mxu0 0.0
    %84 = vmatpush1.msra.mxu0 0.0
    %85 = vmatprep.subr.mxu0 0.0
    %86 = vmatpush1.msra.mxu0 0.0
    %87 = vmatprep.subr.mxu0 0.0
    %88 = vmatpush1.msra.mxu0 0.0
    %89 = vmatprep.subr.mxu0 0.0
    %90 = vmatpush1.msra.mxu0 0.0
    %91 = vmatprep.subr.mxu0 0.0
    %92 = vmatpush1.msra.mxu0 0.0
    %93 = vmatprep.subr.mxu0 0.0
    %94 = vmatpush1.msra.mxu0 0.0
    %95 = vmatprep.subr.mxu0 0.0
    %96 = vmatpush1.msra.mxu0 0.0
    %97 = vmatprep.subr.mxu0 0.0
    %98 = vmatpush1.msra.mxu0 0.0
    %99 = vmatprep.subr.mxu0 0.0
    %100 = vmatpush1.msra.mxu0 0.0
    %101 = vmatprep.subr.mxu0 0.0
    %102 = vmatpush1.msra.mxu0 0.0
    %103 = vmatprep.subr.mxu0 0.0
    %104 = vmatpush1.msra.mxu0 0.0
    %105 = vmatprep.subr.mxu0 0.0
    %106 = vmatpush1.msra.mxu0 0.0
    %107 = vmatprep.subr.mxu0 0.0
    %108 = vmatpush1.msra.mxu0 0.0
    %109 = vmatprep.subr.mxu0 0.0
    %110 = vmatpush1.msra.mxu0 0.0
    %111 = vmatprep.subr.mxu0 0.0
    %112 = vmatpush1.msra.mxu0 0.0
    %113 = vmatprep.subr.mxu0 0.0
    %114 = vmatpush1.msra.mxu0 0.0
    %115 = vmatprep.subr.mxu0 0.0
    %116 = vmatpush1.msra.mxu0 0.0
    %117 = vmatprep.subr.mxu0 0.0
    %118 = vmatpush1.msra.mxu0 0.0
    %119 = vmatprep.subr.mxu0 0.0
    %120 = vmatpush1.msra.mxu0 0.0
    %121 = vmatprep.mubr.f32.mxu0 0.0
    %122 = vmatmul.mubr.f32.gmra.mrb[0].mxu0 %v48
    %v123 = vpop.f32.mrb[0].mxu0
    %v124 = vadd.f32 %v39, %v123
    %v125 = vpop.f32.mrb[0].mxu0
    %126 = vmatprep.mubr.f32.mxu0 0.0
    %127 = vmatmul.mubr.f32.gmra.mrb[0].mxu0 %v51
    %v128 = vpop.f32.mrb[0].mxu0
    %v129 = vadd.f32 %v44, %v128
    %v130 = vpop.f32.mrb[0].mxu0
    %131 = vdwg.mxu0
    %v132 = vmax.f32 %v124, 0.0
    %v133 = vmax.f32 %v129, 0.0
    %135 = vset.pattern.permute.xlu0 0
    %136 = vperm.xlu0 %135, %v32
    %v137 = vpop.permute.xlu0 %136
    %vm139 = vcmask 130048
    %v141 = vsel %vm139, %v31, 0
    %143 = vmatprep.subr.mxu0 0.0
    %144 = vmatpush1.msra.mxu0 %v132
    %145 = vmatprep.subr.mxu0 0.0
    %146 = vmatpush1.msra.mxu0 %v133
    %147 = vmatprep.subr.mxu0 0.0
    %148 = vmatpush1.msra.mxu0 0.0
    %149 = vmatprep.subr.mxu0 0.0
    %150 = vmatpush1.msra.mxu0 0.0
    %151 = vmatprep.subr.mxu0 0.0
    %152 = vmatpush1.msra.mxu0 0.0
    %153 = vmatprep.subr.mxu0 0.0
    %154 = vmatpush1.msra.mxu0 0.0
    %155 = vmatprep.subr.mxu0 0.0
    %156 = vmatpush1.msra.mxu0 0.0
    %157 = vmatprep.subr.mxu0 0.0
    %158 = vmatpush1.msra.mxu0 0.0
    %159 = vmatprep.subr.mxu0 0.0
    %160 = vmatpush1.msra.mxu0 0.0
    %161 = vmatprep.subr.mxu0 0.0
    %162 = vmatpush1.msra.mxu0 0.0
    %163 = vmatprep.subr.mxu0 0.0
    %164 = vmatpush1.msra.mxu0 0.0
    %165 = vmatprep.subr.mxu0 0.0
    %166 = vmatpush1.msra.mxu0 0.0
    %167 = vmatprep.subr.mxu0 0.0
    %168 = vmatpush1.msra.mxu0 0.0
    %169 = vmatprep.subr.mxu0 0.0
    %170 = vmatpush1.msra.mxu0 0.0
    %171 = vmatprep.subr.mxu0 0.0
    %172 = vmatpush1.msra.mxu0 0.0
    %173 = vmatprep.subr.mxu0 0.0
    %174 = vmatpush1.msra.mxu0 0.0
    %175 = vmatprep.subr.mxu0 0.0
    %176 = vmatpush1.msra.mxu0 0.0
    %177 = vmatprep.subr.mxu0 0.0
    %178 = vmatpush1.msra.mxu0 0.0
    %179 = vmatprep.subr.mxu0 0.0
    %180 = vmatpush1.msra.mxu0 0.0
    %181 = vmatprep.subr.mxu0 0.0
    %182 = vmatpush1.msra.mxu0 0.0
    %183 = vmatprep.subr.mxu0 0.0
    %184 = vmatpush1.msra.mxu0 0.0
    %185 = vmatprep.subr.mxu0 0.0
    %186 = vmatpush1.msra.mxu0 0.0
    %187 = vmatprep.subr.mxu0 0.0
    %188 = vmatpush1.msra.mxu0 0.0
    %189 = vmatprep.subr.mxu0 0.0
    %190 = vmatpush1.msra.mxu0 0.0
    %191 = vmatprep.subr.mxu0 0.0
    %192 = vmatpush1.msra.mxu0 0.0
    %193 = vmatprep.subr.mxu0 0.0
    %194 = vmatpush1.msra.mxu0 0.0
    %195 = vmatprep.subr.mxu0 0.0
    %196 = vmatpush1.msra.mxu0 0.0
    %197 = vmatprep.subr.mxu0 0.0
    %198 = vmatpush1.msra.mxu0 0.0
    %199 = vmatprep.subr.mxu0 0.0
    %200 = vmatpush1.msra.mxu0 0.0
    %201 = vmatprep.subr.mxu0 0.0
    %202 = vmatpush1.msra.mxu0 0.0
    %203 = vmatprep.subr.mxu0 0.0
    %204 = vmatpush1.msra.mxu0 0.0
    %205 = vmatprep.subr.mxu0 0.0
    %206 = vmatpush1.msra.mxu0 0.0
    %207 = vmatprep.mubr.f32.mxu0 0.0
    %208 = vmatmul.mubr.f32.gmra.mrb[0].mxu0 %v141
    %v209 = vpop.f32.mrb[0].mxu0
    %v210 = vadd.f32 %v137, %v209
    %v211 = vpop.f32.mrb[0].mxu0
    %212 = vdwg.mxu0
    %v213 = vmax.f32 %v210, 0.0
    %215 = vset.pattern.permute.xlu0 0
    %216 = vperm.xlu0 %215, %v34
    %v217 = vpop.permute.xlu0 %216
    %vm219 = vcmask 64512
    %v221 = vsel %vm219, %v33, 0
    %223 = vmatprep.subr.mxu0 0.0
    %224 = vmatpush1.msra.mxu0 %v213
    %225 = vmatprep.subr.mxu0 0.0
    %226 = vmatpush1.msra.mxu0 0.0
    %227 = vmatprep.subr.mxu0 0.0
    %228 = vmatpush1.msra.mxu0 0.0
    %229 = vmatprep.subr.mxu0 0.0
    %230 = vmatpush1.msra.mxu0 0.0
    %231 = vmatprep.subr.mxu0 0.0
    %232 = vmatpush1.msra.mxu0 0.0
    %233 = vmatprep.subr.mxu0 0.0
    %234 = vmatpush1.msra.mxu0 0.0
    %235 = vmatprep.subr.mxu0 0.0
    %236 = vmatpush1.msra.mxu0 0.0
    %237 = vmatprep.subr.mxu0 0.0
    %238 = vmatpush1.msra.mxu0 0.0
    %239 = vmatprep.subr.mxu0 0.0
    %240 = vmatpush1.msra.mxu0 0.0
    %241 = vmatprep.subr.mxu0 0.0
    %242 = vmatpush1.msra.mxu0 0.0
    %243 = vmatprep.subr.mxu0 0.0
    %244 = vmatpush1.msra.mxu0 0.0
    %245 = vmatprep.subr.mxu0 0.0
    %246 = vmatpush1.msra.mxu0 0.0
    %247 = vmatprep.subr.mxu0 0.0
    %248 = vmatpush1.msra.mxu0 0.0
    %249 = vmatprep.subr.mxu0 0.0
    %250 = vmatpush1.msra.mxu0 0.0
    %251 = vmatprep.subr.mxu0 0.0
    %252 = vmatpush1.msra.mxu0 0.0
    %253 = vmatprep.subr.mxu0 0.0
    %254 = vmatpush1.msra.mxu0 0.0
    %255 = vmatprep.subr.mxu0 0.0
    %256 = vmatpush1.msra.mxu0 0.0
    %257 = vmatprep.subr.mxu0 0.0
    %258 = vmatpush1.msra.mxu0 0.0
    %259 = vmatprep.subr.mxu0 0.0
    %260 = vmatpush1.msra.mxu0 0.0
    %261 = vmatprep.subr.mxu0 0.0
    %262 = vmatpush1.msra.mxu0 0.0
    %263 = vmatprep.subr.mxu0 0.0
    %264 = vmatpush1.msra.mxu0 0.0
    %265 = vmatprep.subr.mxu0 0.0
    %266 = vmatpush1.msra.mxu0 0.0
    %267 = vmatprep.subr.mxu0 0.0
    %268 = vmatpush1.msra.mxu0 0.0
    %269 = vmatprep.subr.mxu0 0.0
    %270 = vmatpush1.msra.mxu0 0.0
    %271 = vmatprep.subr.mxu0 0.0
    %272 = vmatpush1.msra.mxu0 0.0
    %273 = vmatprep.subr.mxu0 0.0
    %274 = vmatpush1.msra.mxu0 0.0
    %275 = vmatprep.subr.mxu0 0.0
    %276 = vmatpush1.msra.mxu0 0.0
    %277 = vmatprep.subr.mxu0 0.0
    %278 = vmatpush1.msra.mxu0 0.0
    %279 = vmatprep.subr.mxu0 0.0
    %280 = vmatpush1.msra.mxu0 0.0
    %281 = vmatprep.subr.mxu0 0.0
    %282 = vmatpush1.msra.mxu0 0.0
    %283 = vmatprep.subr.mxu0 0.0
    %284 = vmatpush1.msra.mxu0 0.0
    %285 = vmatprep.subr.mxu0 0.0
    %286 = vmatpush1.msra.mxu0 0.0
    %287 = vmatprep.mubr.f32.mxu0 0.0
    %288 = vmatmul.mubr.f32.gmra.mrb[0].mxu0 %v221
    %v289 = vpop.f32.mrb[0].mxu0
    %v290 = vadd.f32 %v217, %v289
    %v291 = vpop.f32.mrb[0].mxu0
    %292 = vdwg.mxu0
    %293 = vst [vmem:[#allocation2] sm:$0x1] %v290
    // Predicated region
    $region30: #{boiling_point_nn_t.1} parent=1 // pred_check
      _
    $region31: #{boiling_point_nn_t.1} parent=1 // pred_check_branch
      %295 = sbr.rel (0) target = $region33
    $region32: #{boiling_point_nn_t.1} parent=1 // pred_region
      %s297 = ssub.s32 16, 16
      %298 = vsyncadd [#allocation3], %s297
      %s300 = sshll.u32 [#allocation2], 4
      %s301 = int_to_ptr.vmem [resolvable:$true] %s300
      %303 = dma.vmem_to_hbm [thread:$0]  %s301, 16, %s7, [#allocation3]
    $region33: #{boiling_point_nn_t.1} parent=1 // pred_fallthru
      _
    // Predicated region
    $region34: #{boiling_point_nn_t.1} parent=1 // pred_check
      _
    $region35: #{boiling_point_nn_t.1} parent=1 // pred_check_branch
      %305 = sbr.rel (0) target = $region37
    $region36: #{boiling_point_nn_t.1} parent=1 // pred_region
      %306 = dma.done [#allocation3], 16
    $region37: #{boiling_point_nn_t.1} parent=1 // pred_fallthru
      _
    %307 = vsyncpa [#allocation3], 1

</llo_original>
